<compile_context>
chip_gen: v7x
topology: tpu7x:2x2x1
jax: 0.10.0
libtpu: 0.0.40
codegen_flags: <defaults>
</compile_context>

<pallas_src>
import functools

import jax
import jax.numpy as jnp
from jax.experimental import pallas as pl
from jax.experimental.pallas import tpu as pltpu


# ---------------------------------------------------------------------------
# Shared MLP head: h_in (M, 2D) -> sigmoid logits (M, 1)
# ---------------------------------------------------------------------------
def _mlp_head(h_in, w1, w2, aux, use_bf16):
    h2_dim = w2.shape[1]                       # 128 (static)

    # aux was loaded once by the caller; slice the VALUE (no extra vlds).
    #   row 0        = b1 (256)
    #   row 1[:128]  = b2
    #   row 2[:128]  = w3 row
    #   row 3[0]     = b3
    b1 = aux[0:1, :]                           # (1, 256)
    b2 = aux[1:2, 0:h2_dim]                    # (1, 128)
    w3r = aux[2:3, 0:h2_dim]                   # (1, 128)
    b3 = aux[3:4, 0:1]                         # (1, 1)

    if use_bf16:                               # fewer MXU passes; f32 accumulate
        h_in = h_in.astype(jnp.bfloat16)
        w1 = w1.astype(jnp.bfloat16)
        w2 = w2.astype(jnp.bfloat16)

    # Layer 1: single MXU pass over the fused (M, 2D) input.
    h = jnp.dot(h_in, w1, preferred_element_type=jnp.float32) + b1
    h = jnp.maximum(h, 0.0)                    # ReLU

    # Layer 2: (M, 256) @ (256, 128) + ReLU.
    if use_bf16:
        h = h.astype(jnp.bfloat16)
    h2 = jnp.dot(h, w2, preferred_element_type=jnp.float32) + b2
    h2 = jnp.maximum(h2, 0.0)

    # Layer 3: (128 -> 1) as VPU mul + XLU lane reduce -- no third MXU pass.
    logits = jnp.sum(h2 * w3r, axis=-1, keepdims=True) + b3   # (M, 1)
    return jax.nn.sigmoid(logits)


# ---------------------------------------------------------------------------
# Small-B kernel: whole batch in one invocation, mean computed in-kernel.
# ---------------------------------------------------------------------------
def _disc_kernel_fused(use_bf16, x_ref, w1_ref, w2_ref, aux_ref, o_ref):
    x = x_ref[...]                                             # (B, D) f32
    b, d = x.shape
    # Batch mean, sublane-broadcast to every row (== the reference repeat()).
    m = jnp.sum(x, axis=0, keepdims=True) * (1.0 / b)          # (1, D)
    h_in = jnp.concatenate(
        [x, jnp.broadcast_to(m, (b, d))], axis=-1)             # (B, 2D)
    o_ref[...] = _mlp_head(h_in, w1_ref[...], w2_ref[...], aux_ref[...],
                           use_bf16)


# ---------------------------------------------------------------------------
# Large-B kernel: one (TILE_B, D) tile per grid step; the GLOBAL batch mean is
# precomputed in the wrapper (correctness: cannot be tiled naively).
# ---------------------------------------------------------------------------
def _disc_kernel_tiled(use_bf16, x_ref, m_ref, w1_ref, w2_ref, aux_ref, o_ref):
    x = x_ref[...]                                             # (TILE_B, D)
    tb, d = x.shape
    h_in = jnp.concatenate(
        [x, jnp.broadcast_to(m_ref[...], (tb, d))], axis=-1)   # (TILE_B, 2D)
    o_ref[...] = _mlp_head(h_in, w1_ref[...], w2_ref[...], aux_ref[...],
                           use_bf16)


# ---------------------------------------------------------------------------
# Parameter packing / init
# ---------------------------------------------------------------------------
def pack_aux(params):
    """One-time prepack of the tiny params into a single (4, 256) buffer."""
    h1 = params["b1"].shape[-1]                # 256
    h2 = params["b2"].shape[-1]                # 128
    aux = jnp.zeros((4, h1), jnp.float32)
    aux = aux.at[0, :].set(params["b1"].reshape(-1))
    aux = aux.at[1, :h2].set(params["b2"].reshape(-1))
    aux = aux.at[2, :h2].set(params["w3"].reshape(-1))
    aux = aux.at[3, 0].set(params["b3"].reshape(-1)[0])
    return aux


def init_params(key, input_dim):
    """Deterministic synthetic init matching nn.Linear shapes.
    PyTorch stores W as (out, in); we keep the transposed (in, out) layout."""
    dims = [(2 * input_dim, 256), (256, 128), (128, 1)]
    keys = jax.random.split(key, 2 * len(dims))
    params = {}
    for i, (fan_in, fan_out) in enumerate(dims):
        bound = 1.0 / jnp.sqrt(jnp.float32(fan_in))
        w = jax.random.uniform(keys[2 * i], (fan_in, fan_out),
                               minval=-bound, maxval=bound, dtype=jnp.float32)
        b = jax.random.uniform(keys[2 * i + 1], (1, fan_out),
                               minval=-bound, maxval=bound, dtype=jnp.float32)
        params[f"w{i + 1}"] = w
        params[f"b{i + 1}"] = b
    # Hoisted prepack (perf review item 1): done once here, not per call.
    params["aux"] = pack_aux(params)
    return params


# ---------------------------------------------------------------------------
# Forward wrapper
# ---------------------------------------------------------------------------
def discriminator_forward(x, params, *, use_bf16=False, tile_b=128):
    """x: (B, D) f32.  params: dict with pre-transposed (in, out) weights and
    a pre-packed 'aux' buffer (see pack_aux)."""
    B, D = x.shape
    w1, w2 = params["w1"], params["w2"]        # (2D, 256), (256, 128)
    aux = params.get("aux")
    if aux is None:                            # slow fallback (prefer prepack)
        aux = pack_aux(params)

    if B < tile_b:
        # ---- small-B path: one invocation, grid=(), mean in-kernel --------
        full = lambda shape: pl.BlockSpec(shape, lambda: tuple(0 for _ in shape))
        return pl.pallas_call(
            functools.partial(_disc_kernel_fused, use_bf16),
            out_shape=jax.ShapeDtypeStruct((B, 1), jnp.float32),
            grid=(),
            in_specs=[full(x.shape), full(w1.shape), full(w2.shape),
                      full(aux.shape)],
            out_specs=full((B, 1)),
        )(x, w1, w2, aux)

    # ---- large-B path: "parallel" batch grid, VMEM-resident weights -------
    # Global batch mean MUST be computed before tiling (correctness).
    m = jnp.mean(x, axis=0, keepdims=True)     # (1, D)
    num_tiles = pl.cdiv(B, tile_b)
    b_pad = num_tiles * tile_b
    if b_pad != B:
        x = jnp.pad(x, ((0, b_pad - B), (0, 0)))   # padded rows discarded below

    out = pl.pallas_call(
        functools.partial(_disc_kernel_tiled, use_bf16),
        out_shape=jax.ShapeDtypeStruct((b_pad, 1), jnp.float32),
        grid=(num_tiles,),
        in_specs=[
            pl.BlockSpec((tile_b, D), lambda i: (i, 0)),    # x tile, pipelined
            pl.BlockSpec((1, D), lambda i: (0, 0)),         # mean, resident
            pl.BlockSpec(w1.shape, lambda i: (0, 0)),       # w1, resident
            pl.BlockSpec(w2.shape, lambda i: (0, 0)),       # w2, resident
            pl.BlockSpec(aux.shape, lambda i: (0, 0)),      # aux, resident
        ],
        out_specs=pl.BlockSpec((tile_b, 1), lambda i: (i, 0)),
        compiler_params=pltpu.CompilerParams(
            dimension_semantics=("parallel",)),
    )(x, m, w1, w2, aux)
    return out[:B]


# ---------------------------------------------------------------------------
# Pure-JAX reference reproducing the PyTorch forward exactly.
# ---------------------------------------------------------------------------
def _reference(x, params):
    B = x.shape[0]
    m = jnp.mean(x, axis=0, keepdims=True)
    h = jnp.concatenate([x, jnp.tile(m, (B, 1))], axis=1)
    h = jax.nn.relu(h @ params["w1"] + params["b1"])
    h = jax.nn.relu(h @ params["w2"] + params["b2"])
    return jax.nn.sigmoid(h @ params["w3"] + params["b3"])


if __name__ == "__main__":
    key = jax.random.PRNGKey(0)
    k_x, k_p, k_xl = jax.random.split(key, 3)

    B, D = 8, 32                      # small shapes: batch=8, input_dim=32
    x = jax.random.normal(k_x, (B, D), dtype=jnp.float32)
    params = init_params(k_p, D)
    ref = _reference(x, params)

    # 1) small-B fused kernel, f32 MXU operands (exact path).
    out = jax.block_until_ready(discriminator_forward(x, params))
    assert out.shape == (B, 1), out.shape
    assert jnp.allclose(out, ref, atol=1e-5, rtol=1e-5), (out, ref)

    # 2) small-B fused kernel, bf16 MXU operands (looser tolerance per review).
    out_bf16 = jax.block_until_ready(
        discriminator_forward(x, params, use_bf16=True))
    assert jnp.allclose(out_bf16, ref, atol=2e-2, rtol=2e-2), (out_bf16, ref)

    # 3) batch-tiled path: parallel grid, resident weights, pre-computed mean.
    BL = 256
    xl = jax.random.normal(k_xl, (BL, D), dtype=jnp.float32)
    refl = _reference(xl, params)
    outl = jax.block_until_ready(discriminator_forward(xl, params))
    assert outl.shape == (BL, 1), outl.shape
    assert jnp.allclose(outl, refl, atol=1e-5, rtol=1e-5), (outl, refl)

    print("KERNEL_OK")
</pallas_src>

<mosaic_0001>
module attributes {stable_mosaic.version = 11 : i64} {
  func.func @_disc_kernel_fused(%arg0: memref<8x32xf32, #tpu.memory_space<vmem>>, %arg1: memref<64x256xf32, #tpu.memory_space<vmem>>, %arg2: memref<256x128xf32, #tpu.memory_space<vmem>>, %arg3: memref<4x256xf32, #tpu.memory_space<vmem>>, %arg4: memref<8x1xf32, #tpu.memory_space<vmem>>) attributes {dimension_semantics = [], scalar_prefetch = 0 : i64, scratch_operands = 0 : i64, tpu.core_type = #tpu.core_type<tc>} {
    %c0 = arith.constant 0 : index
    %c0_0 = arith.constant 0 : index
    %0 = vector.load %arg0[%c0, %c0_0] : memref<8x32xf32, #tpu.memory_space<vmem>>, vector<8x32xf32>
    %cst = arith.constant dense<0.000000e+00> : vector<32xf32>
    %1 = vector.multi_reduction <add>, %0, %cst [0] : vector<8x32xf32> to vector<32xf32>
    %2 = vector.shape_cast %1 : vector<32xf32> to vector<1x32xf32>
    %cst_1 = arith.constant 1.250000e-01 : f32
    %3 = vector.broadcast %cst_1 : f32 to vector<1x32xf32>
    %4 = arith.mulf %2, %3 : vector<1x32xf32>
    %5 = vector.shape_cast %4 : vector<1x32xf32> to vector<1x32xf32>
    %6 = vector.broadcast %5 : vector<1x32xf32> to vector<8x32xf32>
    %7 = tpu.concatenate %0, %6 in 1 : vector<8x32xf32>, vector<8x32xf32> -> vector<8x64xf32>
    %c0_2 = arith.constant 0 : index
    %c0_3 = arith.constant 0 : index
    %8 = vector.load %arg1[%c0_2, %c0_3] : memref<64x256xf32, #tpu.memory_space<vmem>>, vector<64x256xf32>
    %c0_4 = arith.constant 0 : index
    %c0_5 = arith.constant 0 : index
    %9 = vector.load %arg2[%c0_4, %c0_5] : memref<256x128xf32, #tpu.memory_space<vmem>>, vector<256x128xf32>
    %c0_6 = arith.constant 0 : index
    %c0_7 = arith.constant 0 : index
    %10 = vector.load %arg3[%c0_6, %c0_7] : memref<4x256xf32, #tpu.memory_space<vmem>>, vector<4x256xf32>
    %11 = vector.extract_strided_slice %10 {offsets = [0, 0], sizes = [1, 256], strides = [1, 1]} : vector<4x256xf32> to vector<1x256xf32>
    %12 = vector.extract_strided_slice %10 {offsets = [1, 0], sizes = [1, 128], strides = [1, 1]} : vector<4x256xf32> to vector<1x128xf32>
    %13 = vector.extract_strided_slice %10 {offsets = [2, 0], sizes = [1, 128], strides = [1, 1]} : vector<4x256xf32> to vector<1x128xf32>
    %14 = vector.extract_strided_slice %10 {offsets = [3, 0], sizes = [1, 1], strides = [1, 1]} : vector<4x256xf32> to vector<1x1xf32>
    %cst_8 = arith.constant dense<0.000000e+00> : vector<8x256xf32>
    %15 = tpu.matmul %7, %8, %cst_8 {dimension_numbers = #tpu.dot_dimension_numbers<[1], [0], [0], [1], [0, 0, 1, 1], [], []>} : vector<8x64xf32>, vector<64x256xf32>, vector<8x256xf32> -> vector<8x256xf32>
    %16 = vector.broadcast %11 : vector<1x256xf32> to vector<8x256xf32>
    %17 = arith.addf %15, %16 : vector<8x256xf32>
    %cst_9 = arith.constant 0.000000e+00 : f32
    %18 = vector.broadcast %cst_9 : f32 to vector<8x256xf32>
    %19 = arith.maximumf %17, %18 : vector<8x256xf32>
    %cst_10 = arith.constant dense<0.000000e+00> : vector<8x128xf32>
    %20 = tpu.matmul %19, %9, %cst_10 {dimension_numbers = #tpu.dot_dimension_numbers<[1], [0], [0], [1], [0, 0, 1, 1], [], []>} : vector<8x256xf32>, vector<256x128xf32>, vector<8x128xf32> -> vector<8x128xf32>
    %21 = vector.broadcast %12 : vector<1x128xf32> to vector<8x128xf32>
    %22 = arith.addf %20, %21 : vector<8x128xf32>
    %cst_11 = arith.constant 0.000000e+00 : f32
    %23 = vector.broadcast %cst_11 : f32 to vector<8x128xf32>
    %24 = arith.maximumf %22, %23 : vector<8x128xf32>
    %25 = vector.broadcast %13 : vector<1x128xf32> to vector<8x128xf32>
    %26 = arith.mulf %24, %25 : vector<8x128xf32>
    %cst_12 = arith.constant dense<0.000000e+00> : vector<8xf32>
    %27 = vector.multi_reduction <add>, %26, %cst_12 [1] : vector<8x128xf32> to vector<8xf32>
    %28 = vector.shape_cast %27 : vector<8xf32> to vector<8x1xf32>
    %29 = vector.broadcast %14 : vector<1x1xf32> to vector<8x1xf32>
    %30 = arith.addf %28, %29 : vector<8x1xf32>
    %31 = arith.negf %30 : vector<8x1xf32>
    %32 = math.exp %31 : vector<8x1xf32>
    %cst_13 = arith.constant 1.000000e+00 : f32
    %33 = vector.broadcast %cst_13 : f32 to vector<8x1xf32>
    %34 = arith.addf %33, %32 : vector<8x1xf32>
    %35 = arith.divf %33, %34 : vector<8x1xf32>
    %c0_14 = arith.constant 0 : index
    %c0_15 = arith.constant 0 : index
    %36 = vector.load %arg4[%c0_14, %c0_15] : memref<8x1xf32, #tpu.memory_space<vmem>>, vector<8x1xf32>
    tpu.vector_store %arg4[%c0_14, %c0_15], %35 {strides = array<i32>} : memref<8x1xf32, #tpu.memory_space<vmem>>, vector<8x1xf32>,
    return
  }
}

</mosaic_0001>

<llo_original>
// kernel: tpu_custom_call.1
$region0: #{tpu_custom_call.1}
  #allocation0 [shape = 'u32[]', space=smem, size = 0x4, offset = 0x4, fixed_abs, tag = 'smem constant byte address 0x4 - core index']
  #allocation1 [shape = 'u32[144,128]{1,0:T(1,128)}', space=vmem, size = 0x12000, scoped, tag = 'internal scratch']
  %s0 = inlined_call_operand.hbm [shape: f32[8,32], index: 0, kind: input, shape index: {}]
  %s1 = inlined_call_operand.hbm [shape: f32[64,256], index: 1, kind: input, shape index: {}]
  %s2 = inlined_call_operand.hbm [shape: f32[256,128], index: 2, kind: input, shape index: {}]
  %s3 = inlined_call_operand.vmem [shape: f32[4,256], index: 3, kind: input, shape index: {}]
  %s4 = inlined_call_operand.vmem [shape: f32[8,1], index: 4, kind: output, shape index: {}]
  %s5 = sld [smem:[#allocation0]]
  $region38: #{tpu_custom_call.1} parent=0
    _
  %s7 = ssub.s32 1, %s5
  %s8 = scalar_select 0, %s7, %s5
  $region1: #{tpu_custom_call.1} parent=0
    #allocation2 [shape = 'u8[4096]{0}', space=vmem, size = 0x1000, scoped, tag = 'input window, operand 0, single buffered']
    #allocation3 [shape = 's32[1]{0}', space=sflag, size = 0x4, scoped, tag = 'scoped memory for tpu_custom_call.1']
    #allocation4 [shape = 'u8[65536]{0}', space=vmem, size = 0x10000, scoped, tag = 'input window, operand 1, single buffered']
    #allocation5 [shape = 's32[1]{0}', space=sflag, size = 0x4, scoped, tag = 'scoped memory for tpu_custom_call.1']
    #allocation6 [shape = 'u8[131072]{0}', space=vmem, size = 0x20000, scoped, tag = 'input window, operand 2, single buffered']
    %9 = vsyncpa [#allocation3], 0
    %10 = vsyncpa [#allocation5], 0
    // Predicated region
    $region2: #{tpu_custom_call.1} parent=1 // pred_check
      _
    $region3: #{tpu_custom_call.1} parent=1 // pred_check_branch
      %12 = sbr.rel (0) target = $region5
    $region4: #{tpu_custom_call.1} parent=1 // pred_region
      %s14 = ssub.s32 128, 128
      %15 = vsyncadd [#allocation3], %s14
      %s17 = sshll.u32 [#allocation2], 4
      %s18 = int_to_ptr.vmem [resolvable:$true] %s17
      %20 = dma.hbm_to_vmem [thread:$0]  %s0, 128, %s18, [#allocation3]
    $region5: #{tpu_custom_call.1} parent=1 // pred_fallthru
      _
    // Predicated region
    $region6: #{tpu_custom_call.1} parent=1 // pred_check
      _
    $region7: #{tpu_custom_call.1} parent=1 // pred_check_branch
      %22 = sbr.rel (0) target = $region9
    $region8: #{tpu_custom_call.1} parent=1 // pred_region
      %s24 = ssub.s32 2048, 2048
      %25 = vsyncadd [#allocation5], %s24
      %s26 = sshll.u32 [#allocation4], 4
      %s27 = int_to_ptr.vmem [resolvable:$true] %s26
      %32 = dma.hbm_to_vmem [thread:$0]  %s1, 2048, %s27, [#allocation5], 256, 256, 16
    $region9: #{tpu_custom_call.1} parent=1 // pred_fallthru
      _
    // Predicated region
    $region10: #{tpu_custom_call.1} parent=1 // pred_check
      _
    $region11: #{tpu_custom_call.1} parent=1 // pred_check_branch
      %34 = sbr.rel (0) target = $region13
    $region12: #{tpu_custom_call.1} parent=1 // pred_region
      %s36 = ssub.s32 4096, 4096
      %37 = vsyncadd [#allocation5], %s36
      %s38 = sshll.u32 [#allocation6], 4
      %s39 = int_to_ptr.vmem [resolvable:$true] %s38
      %44 = dma.hbm_to_vmem [thread:$0]  %s2, 4096, %s39, [#allocation5], 128, 128, 8
    $region13: #{tpu_custom_call.1} parent=1 // pred_fallthru
      _
    // Predicated region
    $region14: #{tpu_custom_call.1} parent=1 // pred_check
      _
    $region15: #{tpu_custom_call.1} parent=1 // pred_check_branch
      %46 = sbr.rel (0) target = $region17
    $region16: #{tpu_custom_call.1} parent=1 // pred_region
      _
    $region17: #{tpu_custom_call.1} parent=1 // pred_fallthru
      _
    // Predicated region
    $region18: #{tpu_custom_call.1} parent=1 // pred_check
      _
    $region19: #{tpu_custom_call.1} parent=1 // pred_check_branch
      %48 = sbr.rel (0) target = $region21
    $region20: #{tpu_custom_call.1} parent=1 // pred_region
      %49 = dma.done [#allocation3], 128
    $region21: #{tpu_custom_call.1} parent=1 // pred_fallthru
      _
    // Predicated region
    $region22: #{tpu_custom_call.1} parent=1 // pred_check
      _
    $region23: #{tpu_custom_call.1} parent=1 // pred_check_branch
      %51 = sbr.rel (0) target = $region25
    $region24: #{tpu_custom_call.1} parent=1 // pred_region
      %52 = dma.done [#allocation5], 2048
    $region25: #{tpu_custom_call.1} parent=1 // pred_fallthru
      _
    // Predicated region
    $region26: #{tpu_custom_call.1} parent=1 // pred_check
      _
    $region27: #{tpu_custom_call.1} parent=1 // pred_check_branch
      %54 = sbr.rel (0) target = $region29
    $region28: #{tpu_custom_call.1} parent=1 // pred_region
      %55 = dma.done [#allocation5], 4096
    $region29: #{tpu_custom_call.1} parent=1 // pred_fallthru
      _
    %v56 = vld [vmem:[#allocation2] sm:$0xff]
    %vm57 = vcmask 261120
    %v58 = vsel %vm57, %v56, 0.0
    %v59 = vrot.slane %v58, 4
    %v60 = vadd.f32 %v58, %v59
    %v61 = vrot.slane %v60, 2
    %v62 = vadd.f32 %v60, %v61
    %v63 = vrot.slane %v62, 1
    %v64 = vadd.f32 %v62, %v63
    %v65 = vmul.f32 %v64, 0.125
    %67 = vrot.lane.b32.xlu0 %v65, 32
    %v68 = vpop.permute.xlu0 %67
    %v70 = vsel %vm57, %v56, %v68
    %v71 = vld [vmem:[#allocation4] sm:$0xff]
    %v72 = vld [vmem:[#allocation4 + $0x8] sm:$0xff]
    %v73 = vld [vmem:[#allocation4 + $0x10] sm:$0xff]
    %v74 = vld [vmem:[#allocation4 + $0x18] sm:$0xff]
    %v75 = vld [vmem:[#allocation4 + $0x20] sm:$0xff]
    %v76 = vld [vmem:[#allocation4 + $0x28] sm:$0xff]
    %v77 = vld [vmem:[#allocation4 + $0x30] sm:$0xff]
    %v78 = vld [vmem:[#allocation4 + $0x38] sm:$0xff]
    %v79 = vld [vmem:[#allocation4 + $0x40] sm:$0xff]
    %v80 = vld [vmem:[#allocation4 + $0x48] sm:$0xff]
    %v81 = vld [vmem:[#allocation4 + $0x50] sm:$0xff]
    %v82 = vld [vmem:[#allocation4 + $0x58] sm:$0xff]
    %v83 = vld [vmem:[#allocation4 + $0x60] sm:$0xff]
    %v84 = vld [vmem:[#allocation4 + $0x68] sm:$0xff]
    %v85 = vld [vmem:[#allocation4 + $0x70] sm:$0xff]
    %v86 = vld [vmem:[#allocation4 + $0x78] sm:$0xff]
    %v87 = vld [vmem:[#allocation6] sm:$0xff]
    %v88 = vld [vmem:[#allocation6 + $0x8] sm:$0xff]
    %v89 = vld [vmem:[#allocation6 + $0x10] sm:$0xff]
    %v90 = vld [vmem:[#allocation6 + $0x18] sm:$0xff]
    %v91 = vld [vmem:[#allocation6 + $0x20] sm:$0xff]
    %v92 = vld [vmem:[#allocation6 + $0x28] sm:$0xff]
    %v93 = vld [vmem:[#allocation6 + $0x30] sm:$0xff]
    %v94 = vld [vmem:[#allocation6 + $0x38] sm:$0xff]
    %v95 = vld [vmem:[#allocation6 + $0x40] sm:$0xff]
    %v96 = vld [vmem:[#allocation6 + $0x48] sm:$0xff]
    %v97 = vld [vmem:[#allocation6 + $0x50] sm:$0xff]
    %v98 = vld [vmem:[#allocation6 + $0x58] sm:$0xff]
    %v99 = vld [vmem:[#allocation6 + $0x60] sm:$0xff]
    %v100 = vld [vmem:[#allocation6 + $0x68] sm:$0xff]
    %v101 = vld [vmem:[#allocation6 + $0x70] sm:$0xff]
    %v102 = vld [vmem:[#allocation6 + $0x78] sm:$0xff]
    %v103 = vld [vmem:[#allocation6 + $0x80] sm:$0xff]
    %v104 = vld [vmem:[#allocation6 + $0x88] sm:$0xff]
    %v105 = vld [vmem:[#allocation6 + $0x90] sm:$0xff]
    %v106 = vld [vmem:[#allocation6 + $0x98] sm:$0xff]
    %v107 = vld [vmem:[#allocation6 + $0xa0] sm:$0xff]
    %v108 = vld [vmem:[#allocation6 + $0xa8] sm:$0xff]
    %v109 = vld [vmem:[#allocation6 + $0xb0] sm:$0xff]
    %v110 = vld [vmem:[#allocation6 + $0xb8] sm:$0xff]
    %v111 = vld [vmem:[#allocation6 + $0xc0] sm:$0xff]
    %v112 = vld [vmem:[#allocation6 + $0xc8] sm:$0xff]
    %v113 = vld [vmem:[#allocation6 + $0xd0] sm:$0xff]
    %v114 = vld [vmem:[#allocation6 + $0xd8] sm:$0xff]
    %v115 = vld [vmem:[#allocation6 + $0xe0] sm:$0xff]
    %v116 = vld [vmem:[#allocation6 + $0xe8] sm:$0xff]
    %v117 = vld [vmem:[#allocation6 + $0xf0] sm:$0xff]
    %v118 = vld [vmem:[#allocation6 + $0xf8] sm:$0xff]
    %v119 = vld [vmem:[%s3] sm:$0xff]
    %v121 = vlaneseq
    %v122 = vshrl.u32 %v121, 7
    %v123 = vsub.s32 0, %v122
    %v124 = vrot.slane %v119, %v123
    %v125 = vlaneseq
    %v126 = vshrl.u32 %v125, 7
    %v127 = vsub.s32 4, %v126
    %v128 = vrot.slane %v119, %v127
    %v131 = vlaneseq
    %v132 = vshrl.u32 %v131, 7
    %v133 = vsub.s32 0, %v132
    %v134 = vrot.slane %v124, %v133
    %v135 = vlaneseq
    %v136 = vshrl.u32 %v135, 7
    %v137 = vsub.s32 0, %v136
    %v138 = vrot.slane %v128, %v137
    %vm139 = vcmask 523264
    %v141 = vsel %vm139, %v70, 0
    %143 = vmatprep.subr.mxu0 %v72
    %144 = vmatpush1.msra.mxu0 %v71
    %145 = vmatprep.subr.mxu0 %v74
    %146 = vmatpush1.msra.mxu0 %v73
    %147 = vmatprep.subr.mxu0 %v76
    %148 = vmatpush1.msra.mxu0 %v75
    %149 = vmatprep.subr.mxu0 %v78
    %150 = vmatpush1.msra.mxu0 %v77
    %151 = vmatprep.subr.mxu0 %v80
    %152 = vmatpush1.msra.mxu0 %v79
    %153 = vmatprep.subr.mxu0 %v82
    %154 = vmatpush1.msra.mxu0 %v81
    %155 = vmatprep.subr.mxu0 %v84
    %156 = vmatpush1.msra.mxu0 %v83
    %157 = vmatprep.subr.mxu0 %v86
    %158 = vmatpush1.msra.mxu0 %v85
    %159 = vmatprep.subr.mxu0 0.0
    %160 = vmatpush1.msra.mxu0 0.0
    %161 = vmatprep.subr.mxu0 0.0
    %162 = vmatpush1.msra.mxu0 0.0
    %163 = vmatprep.subr.mxu0 0.0
    %164 = vmatpush1.msra.mxu0 0.0
    %165 = vmatprep.subr.mxu0 0.0
    %166 = vmatpush1.msra.mxu0 0.0
    %167 = vmatprep.subr.mxu0 0.0
    %168 = vmatpush1.msra.mxu0 0.0
    %169 = vmatprep.subr.mxu0 0.0
    %170 = vmatpush1.msra.mxu0 0.0
    %171 = vmatprep.subr.mxu0 0.0
    %172 = vmatpush1.msra.mxu0 0.0
    %173 = vmatprep.subr.mxu0 0.0
    %174 = vmatpush1.msra.mxu0 0.0
    %175 = vmatprep.subr.mxu0 0.0
    %176 = vmatpush1.msra.mxu0 0.0
    %177 = vmatprep.subr.mxu0 0.0
    %178 = vmatpush1.msra.mxu0 0.0
    %179 = vmatprep.subr.mxu0 0.0
    %180 = vmatpush1.msra.mxu0 0.0
    %181 = vmatprep.subr.mxu0 0.0
    %182 = vmatpush1.msra.mxu0 0.0
    %183 = vmatprep.subr.mxu0 0.0
    %184 = vmatpush1.msra.mxu0 0.0
    %185 = vmatprep.subr.mxu0 0.0
    %186 = vmatpush1.msra.mxu0 0.0
    %187 = vmatprep.subr.mxu0 0.0
    %188 = vmatpush1.msra.mxu0 0.0
    %189 = vmatprep.subr.mxu0 0.0
    %190 = vmatpush1.msra.mxu0 0.0
    %191 = vmatprep.subr.mxu0 0.0
    %192 = vmatpush1.msra.mxu0 0.0
    %193 = vmatprep.subr.mxu0 0.0
    %194 = vmatpush1.msra.mxu0 0.0
    %195 = vmatprep.subr.mxu0 0.0
    %196 = vmatpush1.msra.mxu0 0.0
    %197 = vmatprep.subr.mxu0 0.0
    %198 = vmatpush1.msra.mxu0 0.0
    %199 = vmatprep.subr.mxu0 0.0
    %200 = vmatpush1.msra.mxu0 0.0
    %201 = vmatprep.subr.mxu0 0.0
    %202 = vmatpush1.msra.mxu0 0.0
    %203 = vmatprep.subr.mxu0 0.0
    %204 = vmatpush1.msra.mxu0 0.0
    %205 = vmatprep.subr.mxu0 0.0
    %206 = vmatpush1.msra.mxu0 0.0
    %207 = vmatprep.mubr.f32.mxu0 0.0
    %208 = vmatmul.mubr.f32.gmra.mrb[0].mxu0 %v141
    %v209 = vpop.f32.mrb[0].mxu0
    %v210 = vadd.f32 %v134, %v209
    %v211 = vpop.f32.mrb[0].mxu0
    %v212 = vadd.f32 %v138, %v211
    %213 = vdwg.mxu0
    %v214 = vmax.f32 %v210, 0.0
    %v215 = vmax.f32 %v212, 0.0
    %v216 = vlaneseq
    %v217 = vshrl.u32 %v216, 7
    %v218 = vsub.s32 1, %v217
    %v219 = vrot.slane %v119, %v218
    %220 = vmatprep.subr.mxu0 0.0
    %221 = vmatpush1.msra.mxu0 %v87
    %222 = vmatprep.subr.mxu0 0.0
    %223 = vmatpush1.msra.mxu0 %v88
    %224 = vmatprep.subr.mxu0 0.0
    %225 = vmatpush1.msra.mxu0 %v89
    %226 = vmatprep.subr.mxu0 0.0
    %227 = vmatpush1.msra.mxu0 %v90
    %228 = vmatprep.subr.mxu0 0.0
    %229 = vmatpush1.msra.mxu0 %v91
    %230 = vmatprep.subr.mxu0 0.0
    %231 = vmatpush1.msra.mxu0 %v92
    %232 = vmatprep.subr.mxu0 0.0
    %233 = vmatpush1.msra.mxu0 %v93
    %234 = vmatprep.subr.mxu0 0.0
    %235 = vmatpush1.msra.mxu0 %v94
    %236 = vmatprep.subr.mxu0 0.0
    %237 = vmatpush1.msra.mxu0 %v95
    %238 = vmatprep.subr.mxu0 0.0
    %239 = vmatpush1.msra.mxu0 %v96
    %240 = vmatprep.subr.mxu0 0.0
    %241 = vmatpush1.msra.mxu0 %v97
    %242 = vmatprep.subr.mxu0 0.0
    %243 = vmatpush1.msra.mxu0 %v98
    %244 = vmatprep.subr.mxu0 0.0
    %245 = vmatpush1.msra.mxu0 %v99
    %246 = vmatprep.subr.mxu0 0.0
    %247 = vmatpush1.msra.mxu0 %v100
    %248 = vmatprep.subr.mxu0 0.0
    %249 = vmatpush1.msra.mxu0 %v101
    %250 = vmatprep.subr.mxu0 0.0
    %251 = vmatpush1.msra.mxu0 %v102
    %252 = vmatprep.subr.mxu0 0.0
    %253 = vmatpush1.msra.mxu0 %v103
    %254 = vmatprep.subr.mxu0 0.0
    %255 = vmatpush1.msra.mxu0 %v104
    %256 = vmatprep.subr.mxu0 0.0
    %257 = vmatpush1.msra.mxu0 %v105
    %258 = vmatprep.subr.mxu0 0.0
    %259 = vmatpush1.msra.mxu0 %v106
    %260 = vmatprep.subr.mxu0 0.0
    %261 = vmatpush1.msra.mxu0 %v107
    %262 = vmatprep.subr.mxu0 0.0
    %263 = vmatpush1.msra.mxu0 %v108
    %264 = vmatprep.subr.mxu0 0.0
    %265 = vmatpush1.msra.mxu0 %v109
    %266 = vmatprep.subr.mxu0 0.0
    %267 = vmatpush1.msra.mxu0 %v110
    %268 = vmatprep.subr.mxu0 0.0
    %269 = vmatpush1.msra.mxu0 %v111
    %270 = vmatprep.subr.mxu0 0.0
    %271 = vmatpush1.msra.mxu0 %v112
    %272 = vmatprep.subr.mxu0 0.0
    %273 = vmatpush1.msra.mxu0 %v113
    %274 = vmatprep.subr.mxu0 0.0
    %275 = vmatpush1.msra.mxu0 %v114
    %276 = vmatprep.subr.mxu0 0.0
    %277 = vmatpush1.msra.mxu0 %v115
    %278 = vmatprep.subr.mxu0 0.0
    %279 = vmatpush1.msra.mxu0 %v116
    %280 = vmatprep.subr.mxu0 0.0
    %281 = vmatpush1.msra.mxu0 %v117
    %282 = vmatprep.subr.mxu0 0.0
    %283 = vmatpush1.msra.mxu0 %v118
    %284 = vmatprep.mubr.f32.mxu0 %v215
    %285 = vmatmul.mubr.f32.gmra.mrb[0].mxu0 %v214
    %v286 = vpop.f32.mrb[0].mxu0
    %v287 = vadd.f32 %v219, %v286
    %v288 = vpop.f32.mrb[0].mxu0
    %289 = vdwg.mxu0
    %v290 = vmax.f32 %v287, 0.0
    %v291 = vlaneseq
    %v292 = vshrl.u32 %v291, 7
    %v293 = vsub.s32 2, %v292
    %v294 = vrot.slane %v119, %v293
    %v295 = vmul.f32 %v290, %v294
    %296 = vadd.xlane.f32.xlu0 %v295
    %v297 = vpop.xlane.xlu0 %296
    %v298 = vlaneseq
    %v299 = vshrl.u32 %v298, 7
    %v300 = vsub.s32 3, %v299
    %v301 = vrot.slane %v119, %v300
    %v302 = vadd.f32 %v297, %v301
    %v303 = vxor.u32 %v302, 2147483648
    %v304 = vmul.f32 %v303, 1.442695
    %v305 = vpow.pop %v304
    %v306 = vadd.f32 %v305, 1.0
    %v307 = vrcp.pop %v306
    %v308 = vmul.f32 1.0, %v307
    %vm309 = vcmask 7168
    %310 = vst.msk [vmem:[%s4] sm:$0xff] %vm309, %v308
    // Predicated region
    $region30: #{tpu_custom_call.1} parent=1 // pred_check
      _
    $region31: #{tpu_custom_call.1} parent=1 // pred_check_branch
      %312 = sbr.rel (0) target = $region33
    $region32: #{tpu_custom_call.1} parent=1 // pred_region
      _
    $region33: #{tpu_custom_call.1} parent=1 // pred_fallthru
      _
    // Predicated region
    $region34: #{tpu_custom_call.1} parent=1 // pred_check
      _
    $region35: #{tpu_custom_call.1} parent=1 // pred_check_branch
      %314 = sbr.rel (0) target = $region37
    $region36: #{tpu_custom_call.1} parent=1 // pred_region
      _
    $region37: #{tpu_custom_call.1} parent=1 // pred_fallthru
      _
    %315 = vsyncpa [#allocation3], 1
    %316 = vsyncpa [#allocation5], 1

</llo_original>
